<compile_context>
chip_gen: v6e
topology: v6e:2x2x1
jax: 0.10.0
libtpu: 0.0.40
codegen_flags: <defaults>
</compile_context>

<pallas_src>
import functools

import jax
import jax.numpy as jnp
from jax.experimental import pallas as pl
from jax.experimental.pallas import tpu as pltpu


_EPS = 1e-6  # F.pairwise_distance default eps (added to the difference)


def _cdiv(a, b):
    return -(-a // b)


def _round_up(x, m):
    return _cdiv(x, m) * m


def _default_core_splits():
    # v7x has 2 TensorCores per chip -> split row tiles over a leading
    # "parallel" grid axis. v5e/v6e have a single TC -> no split.
    try:
        kind = jax.devices()[0].device_kind.lower()
        return 2 if "v7" in kind else 1
    except Exception:
        return 1


def _vmem_budget_bytes():
    # Generation-aware budget kept under each chip's default scoped-VMEM limit
    # (v5e ~16 MiB; v6e/v7x 32 MiB default - v7x only has 64 MiB physical).
    try:
        kind = jax.devices()[0].device_kind.lower()
    except Exception:
        kind = ""
    return (12 << 20) if "v5" in kind else (24 << 20)


def _pick_tile_rows(d, itemsize, streams, max_rows=1024):
    """Largest multiple-of-8 row tile whose double-buffered streams fit VMEM."""
    per_row = max(1, streams * 2 * d * itemsize)   # 2 = double buffering
    t = _vmem_budget_bytes() // per_row
    t = min(t, max_rows)
    return int(max(8, (t // 8) * 8))


def _largest_tile_dividing(n_rows, cap):
    """Largest multiple-of-8 divisor of n_rows that is <= cap (n_rows % 8 == 0)."""
    t = max(8, min((cap // 8) * 8, n_rows))
    while t > 8 and n_rows % t != 0:
        t -= 8
    return t


def _fused_tile_rows(n_rows, cap, splits):
    """Largest multiple-of-8 divisor of n_rows <= cap whose block count also
    splits evenly across `splits` cores; only if impossible fall back to 1."""
    best = None
    t = max(8, min((cap // 8) * 8, n_rows))
    while t >= 8:
        if n_rows % t == 0:
            if best is None:
                best = t
            if (n_rows // t) % splits == 0:
                return t, splits
        t -= 8
    return best, 1


# ----------------------------------------------------------------------------
# Kernels
# ----------------------------------------------------------------------------
def _triplet_tile_kernel(a_ref, p_ref, n_ref, out_ref, acc_ref,
                         *, margin, inv_denom, n_valid, tile_rows):
    """Tiled contrastive reduction over pre-gathered triplets (general path)."""
    t = pl.program_id(1)

    @pl.when(t == 0)
    def _init():
        acc_ref[...] = jnp.zeros_like(acc_ref)

    a = a_ref[...].astype(jnp.float32)
    p = p_ref[...].astype(jnp.float32)
    n = n_ref[...].astype(jnp.float32)

    dpos = (a - p) + _EPS
    dneg = (a - n) + _EPS
    pos_loss = jnp.sum(dpos * dpos, axis=-1, keepdims=True)            # (T, 1)
    neg_dist = jnp.sqrt(jnp.sum(dneg * dneg, axis=-1, keepdims=True))  # (T, 1)
    neg_loss = jnp.maximum(margin - neg_dist, 0.0) ** 2                # (T, 1)

    # Mask padded rows and (clamped) overflow tiles via the *nominal* row id.
    tile_idx = pl.program_id(0) * pl.num_programs(1) + t
    row = tile_idx * tile_rows + jax.lax.broadcasted_iota(
        jnp.int32, (tile_rows, 1), 0)
    acc_ref[...] += jnp.where(row < n_valid, pos_loss + neg_loss, 0.0)

    @pl.when(t == pl.num_programs(1) - 1)
    def _finish():
        # Single cross-sublane reduce + 1/(2N) multiply, once per core.
        total = jnp.sum(acc_ref[...]) * inv_denom
        out_ref[...] = jnp.full(out_ref.shape, total, dtype=out_ref.dtype)


def _fused_simple_sampler_kernel(cur_ref, nxt_ref, out_ref, acc_ref,
                                 *, margin, inv_denom, tile_rows):
    """anchor=i, positive=i^1, negative=(i+2)%N; permutation done in-kernel.

    The row permutation is expressed with XLU sublane rolls + VPU selects
    (no MXU work), so HBM streaming of the embedding matrix is the only cost.
    """
    t = pl.program_id(1)

    @pl.when(t == 0)
    def _init():
        acc_ref[...] = jnp.zeros_like(acc_ref)

    tr = tile_rows
    cur = cur_ref[...].astype(jnp.float32)   # (T, D): anchor rows of this tile
    nxt = nxt_ref[...].astype(jnp.float32)   # (8, D): first rows of next tile

    row = jax.lax.broadcasted_iota(jnp.int32, (tr, 1), 0)

    # positive[i] = e[i ^ 1]: parity-select between the two unit sublane rolls
    # (pairs never cross a tile boundary since T is a multiple of 8).
    pos_even = pltpu.roll(cur, shift=tr - 1, axis=0)     # cur[(i + 1) % T]
    pos_odd = pltpu.roll(cur, shift=1, axis=0)           # cur[(i - 1) % T]
    pos = jnp.where((row & 1) == 0, pos_even, pos_odd)

    # negative[i] = e[(i + 2) % N]: roll by two rows within the tile; the two
    # wrap rows come from the first rows of the next tile (halo block).
    neg_roll = pltpu.roll(cur, shift=tr - 2, axis=0)     # cur[(i + 2) % T]
    neg = jnp.where(row == tr - 2, nxt[0:1, :],
                    jnp.where(row == tr - 1, nxt[1:2, :], neg_roll))

    dpos = (cur - pos) + _EPS
    dneg = (cur - neg) + _EPS
    pos_loss = jnp.sum(dpos * dpos, axis=-1, keepdims=True)            # (T, 1)
    neg_dist = jnp.sqrt(jnp.sum(dneg * dneg, axis=-1, keepdims=True))  # (T, 1)
    neg_loss = jnp.maximum(margin - neg_dist, 0.0) ** 2                # (T, 1)

    # Elementwise per-row accumulation; the cross-sublane reduce is deferred.
    acc_ref[...] += pos_loss + neg_loss

    @pl.when(t == pl.num_programs(1) - 1)
    def _finish():
        total = jnp.sum(acc_ref[...]) * inv_denom
        out_ref[...] = jnp.full(out_ref.shape, total, dtype=out_ref.dtype)


# ----------------------------------------------------------------------------
# Wrappers
# ----------------------------------------------------------------------------
def contrastive_loss_pallas(anchor, positive, negative, margin=0.2,
                            *, tile_rows=None, core_splits=None):
    """General path: pre-gathered (N, D) anchor / positive / negative."""
    n_valid, d = anchor.shape
    itemsize = anchor.dtype.itemsize
    splits = _default_core_splits() if core_splits is None else int(core_splits)

    # Pad by at most 7 rows (to a multiple of 8); padded rows are masked
    # in-kernel, so no large jnp.pad round-trip is needed.
    n8 = _round_up(n_valid, 8)
    if n8 != n_valid:
        pad = ((0, n8 - n_valid), (0, 0))
        anchor = jnp.pad(anchor, pad)
        positive = jnp.pad(positive, pad)
        negative = jnp.pad(negative, pad)

    if tile_rows is None:
        cap = _pick_tile_rows(d, itemsize, streams=3)
        tile_rows = _largest_tile_dividing(n8, cap)
    else:
        tile_rows = _largest_tile_dividing(n8, int(tile_rows))

    nblocks = n8 // tile_rows
    tiles_per_split = _cdiv(nblocks, splits)
    last_block = nblocks - 1

    kernel = functools.partial(
        _triplet_tile_kernel, margin=float(margin),
        inv_denom=1.0 / (2.0 * n_valid), n_valid=n_valid, tile_rows=tile_rows)

    def row_map(c, t):
        # Clamp so overflow tiles (when nblocks % splits != 0) stay in bounds;
        # their contribution is zeroed by the nominal-row mask in the kernel.
        return (jnp.minimum(c * tiles_per_split + t, last_block), 0)

    row_spec = pl.BlockSpec((tile_rows, d), row_map)
    partials = pl.pallas_call(
        kernel,
        out_shape=jax.ShapeDtypeStruct((splits * 8, 128), jnp.float32),
        grid=(splits, tiles_per_split),
        in_specs=[row_spec, row_spec, row_spec],
        out_specs=pl.BlockSpec((8, 128), lambda c, t: (c, 0)),
        scratch_shapes=[pltpu.VMEM((tile_rows, 1), jnp.float32)],
        compiler_params=pltpu.CompilerParams(
            dimension_semantics=("parallel", "arbitrary")),
    )(anchor, positive, negative)
    return jnp.sum(partials.reshape(splits, 8, 128)[:, 0, 0])


def contrastive_loss_fused_pallas(embeddings, margin=0.2,
                                  *, tile_rows=None, core_splits=None):
    """Fused path for the default sampler: embeddings read from HBM once."""
    n, d = embeddings.shape
    if n % 8 != 0:
        raise ValueError("fused path requires N % 8 == 0")
    splits = _default_core_splits() if core_splits is None else int(core_splits)

    if tile_rows is None:
        cap = _pick_tile_rows(d, embeddings.dtype.itemsize, streams=1,
                              max_rows=1024)
        tile_rows, splits = _fused_tile_rows(n, cap, splits)
    else:
        tile_rows = max(8, (int(tile_rows) // 8) * 8)
        if n % tile_rows != 0:
            raise ValueError("tile_rows must divide N in the fused path")
        if (n // tile_rows) % splits != 0:
            splits = 1

    nblocks = n // tile_rows
    tiles_per_split = nblocks // splits
    halo_blocks_per_tile = tile_rows // 8

    kernel = functools.partial(
        _fused_simple_sampler_kernel, margin=float(margin),
        inv_denom=1.0 / (2.0 * n), tile_rows=tile_rows)

    def cur_map(c, t):
        return (c * tiles_per_split + t, 0)

    def nxt_map(c, t):                       # first 8 rows of next tile (wraps)
        g = c * tiles_per_split + t
        return (((g + 1) % nblocks) * halo_blocks_per_tile, 0)

    partials = pl.pallas_call(
        kernel,
        out_shape=jax.ShapeDtypeStruct((splits * 8, 128), jnp.float32),
        grid=(splits, tiles_per_split),
        in_specs=[pl.BlockSpec((tile_rows, d), cur_map),
                  pl.BlockSpec((8, d), nxt_map)],
        out_specs=pl.BlockSpec((8, 128), lambda c, t: (c, 0)),
        scratch_shapes=[pltpu.VMEM((tile_rows, 1), jnp.float32)],
        compiler_params=pltpu.CompilerParams(
            dimension_semantics=("parallel", "arbitrary")),
    )(embeddings, embeddings)
    return jnp.sum(partials.reshape(splits, 8, 128)[:, 0, 0])


def simple_triplet_sampler(embeddings, labels):
    # Deterministic glue-level sampler (the PyTorch module receives the sampler
    # externally). Assumes labels laid out as adjacent same-label pairs:
    # anchor i, positive = pair partner (i ^ 1), negative = (i + 2) % N.
    n = labels.shape[0]
    anchor_idx = jnp.arange(n)
    pos_idx = anchor_idx ^ 1
    neg_idx = (anchor_idx + 2) % n
    return anchor_idx, pos_idx, neg_idx


def contrastive_loss(embeddings, labels, margin=0.2,
                     sampler=simple_triplet_sampler, *, core_splits=None):
    n = embeddings.shape[0]
    if sampler is simple_triplet_sampler and n % 8 == 0:
        # Default sampler: triplet permutation happens inside the kernel, so
        # the embedding matrix is streamed from HBM exactly once.
        return contrastive_loss_fused_pallas(
            embeddings, margin=margin, core_splits=core_splits)
    # TODO(synk): for arbitrary external samplers the three wrapper gathers
    # still cost ~3x HBM traffic; an in-kernel scalar-prefetch / DMA row gather
    # would cut this to ~1x but needs per-row DMA batching to beat XLA's gather.
    a_idx, p_idx, n_idx = sampler(embeddings, labels)
    return contrastive_loss_pallas(
        embeddings[a_idx], embeddings[p_idx], embeddings[n_idx],
        margin=margin, core_splits=core_splits)


# ----------------------------------------------------------------------------
# Demo / self-test
# ----------------------------------------------------------------------------
if __name__ == "__main__":
    def ref_loss(emb, a_idx, p_idx, n_idx, margin):
        e = emb.astype(jnp.float32)
        dpos = e[a_idx] - e[p_idx] + _EPS
        dneg = e[a_idx] - e[n_idx] + _EPS
        pos = jnp.sum(dpos ** 2, axis=-1)
        neg = jnp.maximum(margin - jnp.sqrt(jnp.sum(dneg ** 2, axis=-1)),
                          0.0) ** 2
        return jnp.concatenate([pos, neg]).mean()

    root = jax.random.PRNGKey(0)
    k0, k1, k2, k3, k4 = jax.random.split(root, 5)

    # 1. Fused path (default sampler), single tile.
    N, D = 8, 32
    emb = jax.random.normal(k0, (N, D), dtype=jnp.float32)
    labels = jnp.repeat(jnp.arange(N // 2), 2)          # [0,0,1,1,2,2,3,3]
    loss = jax.block_until_ready(contrastive_loss(emb, labels, margin=0.2))
    a_i, p_i, n_i = simple_triplet_sampler(emb, labels)
    ref = ref_loss(emb, a_i, p_i, n_i, 0.2)
    assert jnp.allclose(loss, ref, atol=1e-5, rtol=1e-5), (loss, ref)

    # 2. Fused path, multi-tile: exercises sublane rolls + halo wrap + init/
    #    finish accumulation across grid steps (tile_rows forced to 8).
    N2, D2 = 32, 64
    emb2 = jax.random.normal(k1, (N2, D2), dtype=jnp.float32)
    labels2 = jnp.repeat(jnp.arange(N2 // 2), 2)
    a_i2, p_i2, n_i2 = simple_triplet_sampler(emb2, labels2)
    loss2 = jax.block_until_ready(contrastive_loss_fused_pallas(
        emb2, margin=0.2, tile_rows=8, core_splits=1))
    ref2 = ref_loss(emb2, a_i2, p_i2, n_i2, 0.2)
    assert jnp.allclose(loss2, ref2, atol=1e-5, rtol=1e-5), (loss2, ref2)

    # 2b. Fused path, bf16 input, single larger tile (multi-sublane-tile rolls).
    emb2b = emb2.astype(jnp.bfloat16)
    loss2b = jax.block_until_ready(contrastive_loss_fused_pallas(
        emb2b, margin=0.2, core_splits=1))
    ref2b = ref_loss(emb2b, a_i2, p_i2, n_i2, 0.2)
    assert jnp.allclose(loss2b, ref2b, atol=1e-4, rtol=1e-4), (loss2b, ref2b)

    # 3. General path (pre-gathered triplets); N not a multiple of 8 exercises
    #    the <=7-row pad plus in-kernel row masking.
    N3, D3 = 12, 40
    a = jax.random.normal(k2, (N3, D3), dtype=jnp.float32)
    p = jax.random.normal(k3, (N3, D3), dtype=jnp.float32)
    ng = jax.random.normal(k4, (N3, D3), dtype=jnp.float32)
    loss3 = jax.block_until_ready(contrastive_loss_pallas(a, p, ng, margin=0.2))
    dpos3 = a - p + _EPS
    dneg3 = a - ng + _EPS
    ref3 = jnp.concatenate([
        jnp.sum(dpos3 ** 2, axis=-1),
        jnp.maximum(0.2 - jnp.sqrt(jnp.sum(dneg3 ** 2, axis=-1)), 0.0) ** 2,
    ]).mean()
    assert jnp.allclose(loss3, ref3, atol=1e-5, rtol=1e-5), (loss3, ref3)

    print("KERNEL_OK")
</pallas_src>

<mosaic_0001>
module attributes {stable_mosaic.version = 11 : i64} {
  func.func @_fused_simple_sampler_kernel(%arg0: i32, %arg1: i32, %arg2: memref<8x32xf32, #tpu.memory_space<vmem>>, %arg3: memref<8x32xf32, #tpu.memory_space<vmem>>, %arg4: memref<8x128xf32, #tpu.memory_space<vmem>>, %arg5: memref<8x1xf32, #tpu.memory_space<vmem>>) attributes {dimension_semantics = [#tpu.dimension_semantics<parallel>, #tpu.dimension_semantics<arbitrary>], iteration_bounds = array<i64: 1, 1>, scalar_prefetch = 0 : i64, scratch_operands = 1 : i64, tpu.core_type = #tpu.core_type<tc>, window_params = [{transform_indices = @transform_0, window_bounds = array<i64: 8, 32>}, {transform_indices = @transform_1, window_bounds = array<i64: 8, 32>}, {transform_indices = @transform_2, window_bounds = array<i64: 8, 128>}]} {
    %c0_i32 = arith.constant 0 : i32
    %0 = arith.cmpi eq, %arg1, %c0_i32 : i32
    %1 = arith.extui %0 : i1 to i32
    %c0_i32_0 = arith.constant 0 : i32
    %2 = arith.cmpi ne, %1, %c0_i32_0 : i32
    scf.if %2 {
      %cst_19 = arith.constant 0.000000e+00 : f32
      %57 = vector.broadcast %cst_19 : f32 to vector<8x1xf32>
      %c0_20 = arith.constant 0 : index
      %c0_21 = arith.constant 0 : index
      %58 = vector.load %arg5[%c0_20, %c0_21] : memref<8x1xf32, #tpu.memory_space<vmem>>, vector<8x1xf32>
      tpu.vector_store %arg5[%c0_20, %c0_21], %57 {strides = array<i32>} : memref<8x1xf32, #tpu.memory_space<vmem>>, vector<8x1xf32>,
    } else {
    }
    %c0 = arith.constant 0 : index
    %c0_1 = arith.constant 0 : index
    %3 = vector.load %arg2[%c0, %c0_1] : memref<8x32xf32, #tpu.memory_space<vmem>>, vector<8x32xf32>
    %c0_2 = arith.constant 0 : index
    %c0_3 = arith.constant 0 : index
    %4 = vector.load %arg3[%c0_2, %c0_3] : memref<8x32xf32, #tpu.memory_space<vmem>>, vector<8x32xf32>
    %5 = tpu.iota {dimensions = array<i32: 0>} : vector<8x1xi32>
    %c7_i32 = arith.constant 7 : i32
    %6 = tpu.dynamic_rotate %3 by %c7_i32 dim 0 : vector<8x32xf32>, i32 -> vector<8x32xf32>
    %c1_i32 = arith.constant 1 : i32
    %7 = tpu.dynamic_rotate %3 by %c1_i32 dim 0 : vector<8x32xf32>, i32 -> vector<8x32xf32>
    %c1_i32_4 = arith.constant 1 : i32
    %8 = vector.broadcast %c1_i32_4 : i32 to vector<8x1xi32>
    %9 = arith.andi %5, %8 : vector<8x1xi32>
    %c0_i32_5 = arith.constant 0 : i32
    %10 = vector.broadcast %c0_i32_5 : i32 to vector<8x1xi32>
    %11 = arith.cmpi eq, %9, %10 : vector<8x1xi32>
    %12 = vector.shape_cast %11 : vector<8x1xi1> to vector<8x1xi1>
    %13 = vector.broadcast %12 : vector<8x1xi1> to vector<8x32xi1>
    %14 = arith.select %13, %6, %7 : vector<8x32xi1>, vector<8x32xf32>
    %c6_i32 = arith.constant 6 : i32
    %15 = tpu.dynamic_rotate %3 by %c6_i32 dim 0 : vector<8x32xf32>, i32 -> vector<8x32xf32>
    %c6_i32_6 = arith.constant 6 : i32
    %16 = vector.broadcast %c6_i32_6 : i32 to vector<8x1xi32>
    %17 = arith.cmpi eq, %5, %16 : vector<8x1xi32>
    %18 = vector.extract_strided_slice %4 {offsets = [0, 0], sizes = [1, 32], strides = [1, 1]} : vector<8x32xf32> to vector<1x32xf32>
    %c7_i32_7 = arith.constant 7 : i32
    %19 = vector.broadcast %c7_i32_7 : i32 to vector<8x1xi32>
    %20 = arith.cmpi eq, %5, %19 : vector<8x1xi32>
    %21 = vector.extract_strided_slice %4 {offsets = [1, 0], sizes = [1, 32], strides = [1, 1]} : vector<8x32xf32> to vector<1x32xf32>
    %22 = vector.shape_cast %20 : vector<8x1xi1> to vector<8x1xi1>
    %23 = vector.broadcast %22 : vector<8x1xi1> to vector<8x32xi1>
    %24 = vector.shape_cast %21 : vector<1x32xf32> to vector<1x32xf32>
    %25 = vector.broadcast %24 : vector<1x32xf32> to vector<8x32xf32>
    %26 = arith.select %23, %25, %15 : vector<8x32xi1>, vector<8x32xf32>
    %27 = vector.shape_cast %17 : vector<8x1xi1> to vector<8x1xi1>
    %28 = vector.broadcast %27 : vector<8x1xi1> to vector<8x32xi1>
    %29 = vector.shape_cast %18 : vector<1x32xf32> to vector<1x32xf32>
    %30 = vector.broadcast %29 : vector<1x32xf32> to vector<8x32xf32>
    %31 = arith.select %28, %30, %26 : vector<8x32xi1>, vector<8x32xf32>
    %32 = arith.subf %3, %14 : vector<8x32xf32>
    %cst = arith.constant 9.99999997E-7 : f32
    %33 = vector.broadcast %cst : f32 to vector<8x32xf32>
    %34 = arith.addf %32, %33 : vector<8x32xf32>
    %35 = arith.subf %3, %31 : vector<8x32xf32>
    %cst_8 = arith.constant 9.99999997E-7 : f32
    %36 = vector.broadcast %cst_8 : f32 to vector<8x32xf32>
    %37 = arith.addf %35, %36 : vector<8x32xf32>
    %38 = arith.mulf %34, %34 : vector<8x32xf32>
    %cst_9 = arith.constant dense<0.000000e+00> : vector<8xf32>
    %39 = vector.multi_reduction <add>, %38, %cst_9 [1] : vector<8x32xf32> to vector<8xf32>
    %40 = vector.shape_cast %39 : vector<8xf32> to vector<8x1xf32>
    %41 = arith.mulf %37, %37 : vector<8x32xf32>
    %cst_10 = arith.constant dense<0.000000e+00> : vector<8xf32>
    %42 = vector.multi_reduction <add>, %41, %cst_10 [1] : vector<8x32xf32> to vector<8xf32>
    %43 = vector.shape_cast %42 : vector<8xf32> to vector<8x1xf32>
    %44 = math.sqrt %43 : vector<8x1xf32>
    %cst_11 = arith.constant 2.000000e-01 : f32
    %45 = vector.broadcast %cst_11 : f32 to vector<8x1xf32>
    %46 = arith.subf %45, %44 : vector<8x1xf32>
    %cst_12 = arith.constant 0.000000e+00 : f32
    %47 = vector.broadcast %cst_12 : f32 to vector<8x1xf32>
    %48 = arith.maximumf %46, %47 : vector<8x1xf32>
    %49 = arith.mulf %48, %48 : vector<8x1xf32>
    %c0_13 = arith.constant 0 : index
    %c0_14 = arith.constant 0 : index
    %50 = vector.load %arg5[%c0_13, %c0_14] : memref<8x1xf32, #tpu.memory_space<vmem>>, vector<8x1xf32>
    %51 = arith.addf %40, %49 : vector<8x1xf32>
    %52 = arith.addf %50, %51 : vector<8x1xf32>
    %c0_15 = arith.constant 0 : index
    %c0_16 = arith.constant 0 : index
    %53 = vector.load %arg5[%c0_15, %c0_16] : memref<8x1xf32, #tpu.memory_space<vmem>>, vector<8x1xf32>
    tpu.vector_store %arg5[%c0_15, %c0_16], %52 {strides = array<i32>} : memref<8x1xf32, #tpu.memory_space<vmem>>, vector<8x1xf32>,
    %c0_i32_17 = arith.constant 0 : i32
    %54 = arith.cmpi eq, %arg1, %c0_i32_17 : i32
    %55 = arith.extui %54 : i1 to i32
    %c0_i32_18 = arith.constant 0 : i32
    %56 = arith.cmpi ne, %55, %c0_i32_18 : i32
    scf.if %56 {
      %c0_19 = arith.constant 0 : index
      %c0_20 = arith.constant 0 : index
      %57 = vector.load %arg5[%c0_19, %c0_20] : memref<8x1xf32, #tpu.memory_space<vmem>>, vector<8x1xf32>
      %58 = vector.shape_cast %57 : vector<8x1xf32> to vector<1x8x1xf32>
      %cst_21 = arith.constant dense<0.000000e+00> : vector<1xf32>
      %59 = vector.multi_reduction <add>, %58, %cst_21 [1, 2] : vector<1x8x1xf32> to vector<1xf32>
      %60 = vector.shape_cast %59 : vector<1xf32> to vector<1x1x1xf32>
      %61 = vector.extract %60[0, 0, 0] : f32 from vector<1x1x1xf32>
      %cst_22 = arith.constant 6.250000e-02 : f32
      %62 = arith.mulf %61, %cst_22 : f32
      %63 = vector.broadcast %62 : f32 to vector<8x128xf32>
      %c0_23 = arith.constant 0 : index
      %c0_24 = arith.constant 0 : index
      %64 = vector.load %arg4[%c0_23, %c0_24] : memref<8x128xf32, #tpu.memory_space<vmem>>, vector<8x128xf32>
      tpu.vector_store %arg4[%c0_23, %c0_24], %63 {strides = array<i32>} : memref<8x128xf32, #tpu.memory_space<vmem>>, vector<8x128xf32>,
    } else {
    }
    return
  }
  func.func @transform_0(%arg0: i32, %arg1: i32) -> (i32, i32) {
    %c1_i32 = arith.constant 1 : i32
    %0 = arith.muli %arg0, %c1_i32 : i32
    %1 = arith.addi %0, %arg1 : i32
    %c0_i32 = arith.constant 0 : i32
    %c0_i32_0 = arith.constant 0 : i32
    return %1, %c0_i32 : i32, i32
  }
  func.func @transform_1(%arg0: i32, %arg1: i32) -> (i32, i32) {
    %c1_i32 = arith.constant 1 : i32
    %0 = arith.muli %arg0, %c1_i32 : i32
    %1 = arith.addi %0, %arg1 : i32
    %c1_i32_0 = arith.constant 1 : i32
    %2 = arith.addi %1, %c1_i32_0 : i32
    %c1_i32_1 = arith.constant 1 : i32
    %c0_i32 = arith.constant 0 : i32
    %3 = arith.cmpi eq, %c1_i32_1, %c0_i32 : i32
    %c1_i32_2 = arith.constant 1 : i32
    %4 = arith.select %3, %c1_i32_2, %c1_i32_1 : i32
    %5 = arith.remsi %2, %4 : i32
    %c0_i32_3 = arith.constant 0 : i32
    %6 = arith.cmpi ne, %5, %c0_i32_3 : i32
    %c0_i32_4 = arith.constant 0 : i32
    %7 = arith.cmpi slt, %5, %c0_i32_4 : i32
    %c0_i32_5 = arith.constant 0 : i32
    %8 = arith.cmpi slt, %4, %c0_i32_5 : i32
    %9 = arith.xori %7, %8 : i1
    %10 = arith.andi %9, %6 : i1
    %11 = arith.addi %5, %4 : i32
    %12 = arith.select %10, %11, %5 : i32
    %c1_i32_6 = arith.constant 1 : i32
    %13 = arith.muli %12, %c1_i32_6 : i32
    %c0_i32_7 = arith.constant 0 : i32
    %c0_i32_8 = arith.constant 0 : i32
    return %13, %c0_i32_7 : i32, i32
  }
  func.func @transform_2(%arg0: i32, %arg1: i32) -> (i32, i32) {
    %c0_i32 = arith.constant 0 : i32
    %c0_i32_0 = arith.constant 0 : i32
    return %arg0, %c0_i32 : i32, i32
  }
}

</mosaic_0001>

<llo_original>
// kernel: tpu_custom_call.1
$region0: #{tpu_custom_call.1}
  #allocation0 [shape = 'u32[]', space=smem, size = 0x4, offset = 0x4, fixed_abs, tag = 'smem constant byte address 0x4 - core index']
  #allocation1 [shape = 'u32[144,128]{1,0:T(1,128)}', space=vmem, size = 0x12000, scoped, tag = 'internal scratch']
  #allocation2 [shape = 'f32[8,1]{1,0:T(8,128)}', space=vmem, size = 0x1000, scoped, tag = 'scratch operand']
  %s0 = inlined_call_operand.hbm [shape: f32[8,32], index: 0, kind: input, shape index: {}]
  %s1 = inlined_call_operand.hbm [shape: f32[8,32], index: 1, kind: input, shape index: {}]
  %s2 = inlined_call_operand.hbm [shape: f32[8,128], index: 2, kind: output, shape index: {}]
  %s3 = sld [smem:[#allocation0]]
  $region34: #{tpu_custom_call.1} parent=0
    _
  %s5 = ssub.s32 1, %s3
  %s6 = scalar_select 0, %s5, %s3
  $region1: #{tpu_custom_call.1} parent=0
    #allocation3 [shape = 'u8[4096]{0}', space=vmem, size = 0x1000, scoped, tag = 'input window, operand 0, single buffered']
    #allocation4 [shape = 's32[1]{0}', space=sflag, size = 0x4, scoped, tag = 'scoped memory for tpu_custom_call.1']
    #allocation5 [shape = 's32[1]{0}', space=sflag, size = 0x4, scoped, tag = 'scoped memory for tpu_custom_call.1']
    #allocation6 [shape = 'u8[4096]{0}', space=vmem, size = 0x1000, scoped, tag = 'input window, operand 1, single buffered']
    #allocation7 [shape = 's32[1]{0}', space=sflag, size = 0x4, scoped, tag = 'scoped memory for tpu_custom_call.1']
    #allocation8 [shape = 'u8[4096]{0}', space=vmem, size = 0x1000, scoped, tag = 'output window, operand 0, single buffered']
    %7 = vsyncpa [#allocation4], 0
    %8 = vsyncpa [#allocation7], 0
    %9 = vsyncpa [#allocation5], 0
    // Predicated region
    $region2: #{tpu_custom_call.1} parent=1 // pred_check
      _
    $region3: #{tpu_custom_call.1} parent=1 // pred_check_branch
      %11 = sbr.rel (0) target = $region5
    $region4: #{tpu_custom_call.1} parent=1 // pred_region
      %s12 = sadd.s32 0, 0
      %s14 = ssub.s32 128, 128
      %15 = vsyncadd [#allocation4], %s14
      %s16 = smul.addr %s12, 128
      %s17 = scalar_lea.hbm %s0, %s16
      %s19 = sshll.u32 [#allocation3], 4
      %s20 = int_to_ptr.vmem [resolvable:$true] %s19
      %22 = dma.hbm_to_vmem [thread:$0]  %s17, 128, %s20, [#allocation4]
    $region5: #{tpu_custom_call.1} parent=1 // pred_fallthru
      _
    // Predicated region
    $region6: #{tpu_custom_call.1} parent=1 // pred_check
      _
    $region7: #{tpu_custom_call.1} parent=1 // pred_check_branch
      %24 = sbr.rel (0) target = $region9
    $region8: #{tpu_custom_call.1} parent=1 // pred_region
      %s26 = ssub.s32 128, 128
      %27 = vsyncadd [#allocation7], %s26
      %s29 = sshll.u32 [#allocation6], 4
      %s30 = int_to_ptr.vmem [resolvable:$true] %s29
      %32 = dma.hbm_to_vmem [thread:$0]  %s1, 128, %s30, [#allocation7]
    $region9: #{tpu_custom_call.1} parent=1 // pred_fallthru
      _
    // Predicated region
    $region10: #{tpu_custom_call.1} parent=1 // pred_check
      _
    $region11: #{tpu_custom_call.1} parent=1 // pred_check_branch
      %34 = sbr.rel (0) target = $region13
    $region12: #{tpu_custom_call.1} parent=1 // pred_region
      %35 = dma.done [#allocation4], 128
    $region13: #{tpu_custom_call.1} parent=1 // pred_fallthru
      _
    // Predicated region
    $region14: #{tpu_custom_call.1} parent=1 // pred_check
      _
    $region15: #{tpu_custom_call.1} parent=1 // pred_check_branch
      %37 = sbr.rel (0) target = $region17
    $region16: #{tpu_custom_call.1} parent=1 // pred_region
      %38 = dma.done [#allocation7], 128
    $region17: #{tpu_custom_call.1} parent=1 // pred_fallthru
      _
    %s39 = sadd.s32 0, 0
    %p40 = scmp.eq.s32.totalorder 0, 0
    // Predicated region
    $region18: #{tpu_custom_call.1} parent=1 // pred_check
      %p41 = pneg %p40
    $region19: #{tpu_custom_call.1} parent=1 // pred_check_branch
      %43 = sbr.rel (%p41) target = $region21
    $region20: #{tpu_custom_call.1} parent=1 // pred_region
      %vm44 = vcmask 7168
      %45 = vst.msk [vmem:[#allocation2] sm:$0xff] %vm44, 0.0
    $region21: #{tpu_custom_call.1} parent=1 // pred_fallthru
      _
    %v46 = vld [vmem:[#allocation3] sm:$0xff]
    %v47 = vld [vmem:[#allocation6] sm:$0xff]
    %v48 = vlaneseq
    %v49 = vshrl.u32 %v48, 7
    %v50 = vrot.slane %v46, 1
    %v51 = vrot.slane %v46, 7
    %v52 = vand.u32 %v49, 1
    %vm53 = vcmp.eq.s32.totalorder %v52, 0
    %v54 = vsel %vm53, 1, 0
    %vm55 = vcmp.eq.s32.totalorder %v54, 1
    %v56 = vsel %vm55, %v50, %v51
    %v57 = vrot.slane %v46, 2
    %vm58 = vcmp.eq.s32.totalorder %v49, 6
    %vm59 = vcmp.eq.s32.totalorder %v49, 7
    %v60 = vsel %vm59, 1, 0
    %vm61 = vcmp.eq.s32.totalorder %v60, 1
    %v62 = vlaneseq
    %v63 = vshrl.u32 %v62, 7
    %v64 = vsub.s32 1, %v63
    %v65 = vrot.slane %v47, %v64
    %v66 = vsel %vm61, %v65, %v57
    %v67 = vsel %vm58, 1, 0
    %vm68 = vcmp.eq.s32.totalorder %v67, 1
    %v69 = vlaneseq
    %v70 = vshrl.u32 %v69, 7
    %v71 = vsub.s32 0, %v70
    %v72 = vrot.slane %v47, %v71
    %v73 = vsel %vm68, %v72, %v66
    %v74 = vsub.f32 %v46, %v56
    %v75 = vadd.f32 %v74, 1e-06
    %v76 = vsub.f32 %v46, %v73
    %v77 = vadd.f32 %v76, 1e-06
    %v78 = vmul.f32 %v75, %v75
    %vm79 = vcmask 261120
    %v80 = vsel %vm79, %v78, 0.0
    %81 = vadd.xlane.f32.xlu0 %v80
    %v82 = vpop.xlane.xlu0 %81
    %v83 = vmul.f32 %v77, %v77
    %v84 = vsel %vm79, %v83, 0.0
    %85 = vadd.xlane.f32.xlu0 %v84
    %v86 = vpop.xlane.xlu0 %85
    %v87 = vrsqrt.pop %v86
    %v88 = vmul.f32 %v86, %v87
    %vm89 = vcmp.eq.f32.partialorder %v86, inf
    %v90 = vsel %vm89, %v86, %v88
    %vm91 = vcmp.eq.f32.partialorder %v86, 0.0
    %v92 = vand.u32 %v86, 2147483648
    %v93 = vsel %vm91, %v92, %v90
    %v94 = vsub.f32 0.2, %v93
    %v95 = vmax.f32 %v94, 0.0
    %v96 = vmul.f32 %v95, %v95
    %v97 = vld [vmem:[#allocation2] sm:$0xff]
    %v98 = vadd.f32 %v82, %v96
    %v99 = vadd.f32 %v97, %v98
    %vm100 = vcmask 7168
    %101 = vst.msk [vmem:[#allocation2] sm:$0xff] %vm100, %v99
    // Predicated region
    $region22: #{tpu_custom_call.1} parent=1 // pred_check
      %p102 = pneg %p40
    $region23: #{tpu_custom_call.1} parent=1 // pred_check_branch
      %104 = sbr.rel (%p102) target = $region25
    $region24: #{tpu_custom_call.1} parent=1 // pred_region
      %v105 = vld [vmem:[#allocation2] sm:$0xff]
      %v106 = vsel %vm100, %v105, 0.0
      %107 = vadd.xlane.f32.xlu0 %v106
      %v108 = vpop.xlane.xlu0 %107
      %v109 = vrot.slane %v108, 4
      %v110 = vadd.f32 %v108, %v109
      %v111 = vrot.slane %v110, 2
      %v112 = vadd.f32 %v110, %v111
      %v113 = vrot.slane %v112, 1
      %v114 = vadd.f32 %v112, %v113
      %s115 = vtos %v114
      %s116 = smul.f32 %s115, 0.0625
      %v117 = vstv %s116
      %118 = vst [vmem:[#allocation8] sm:$0xff] %v117
    $region25: #{tpu_custom_call.1} parent=1 // pred_fallthru
      _
    // Predicated region
    $region26: #{tpu_custom_call.1} parent=1 // pred_check
      _
    $region27: #{tpu_custom_call.1} parent=1 // pred_check_branch
      %120 = sbr.rel (0) target = $region29
    $region28: #{tpu_custom_call.1} parent=1 // pred_region
      %s122 = ssub.s32 128, 128
      %123 = vsyncadd [#allocation5], %s122
      %s125 = sshll.u32 [#allocation8], 4
      %s126 = int_to_ptr.vmem [resolvable:$true] %s125
      %128 = dma.vmem_to_hbm [thread:$0]  %s126, 128, %s2, [#allocation5]
    $region29: #{tpu_custom_call.1} parent=1 // pred_fallthru
      _
    // Predicated region
    $region30: #{tpu_custom_call.1} parent=1 // pred_check
      _
    $region31: #{tpu_custom_call.1} parent=1 // pred_check_branch
      %130 = sbr.rel (0) target = $region33
    $region32: #{tpu_custom_call.1} parent=1 // pred_region
      %131 = dma.done [#allocation5], 128
    $region33: #{tpu_custom_call.1} parent=1 // pred_fallthru
      _
    %132 = vsyncpa [#allocation4], 1
    %133 = vsyncpa [#allocation7], 1
    %134 = vsyncpa [#allocation5], 1

</llo_original>
